<compile_context>
chip_gen: v6e
topology: v6e:2x2x1
jax: 0.10.0
libtpu: 0.0.40
codegen_flags: <defaults>
</compile_context>

<pallas_src>
import functools

import jax
import jax.numpy as jnp
from jax.experimental import pallas as pl
from jax.experimental.pallas import tpu as pltpu


def _disc_loss_kernel(x_ref, w_ref, b_ref, out_ref, acc0_ref, acc1_ref, *,
                      d, tk, half, denom, needs_mask):
    """Grid axis 0 walks the flattened feature dim D in chunks of tk.

    x_ref  : (N, tk)  input chunk (any float dtype; cast to f32 in-register)
    w_ref  : (2, tk)  f32  lane-dense discriminator weight chunk (row c = w[:, c])
    b_ref  : (2,)     f32  bias, SMEM
    out_ref: (1, 1)   f32  scalar loss, SMEM
    acc0/1 : (N, 1)   f32  VMEM per-logit accumulators (persist across chunks)
    """
    k = pl.program_id(0)

    @pl.when(k == 0)
    def _():
        acc0_ref[...] = jnp.zeros_like(acc0_ref)
        acc1_ref[...] = jnp.zeros_like(acc1_ref)

    xf = x_ref[...].astype(jnp.float32)          # (N, tk)
    w = w_ref[...]                               # (2, tk)
    p0 = xf * w[0:1, :]                          # (N, tk)
    p1 = xf * w[1:2, :]
    if needs_mask:
        # last chunk may run past D; the out-of-range VMEM contents are
        # undefined, so select 0 on the products (select never propagates NaN).
        col = jax.lax.broadcasted_iota(jnp.int32, (1, tk), 1) + k * tk
        valid = col < d
        p0 = jnp.where(valid, p0, 0.0)
        p1 = jnp.where(valid, p1, 0.0)
    acc0_ref[...] += jnp.sum(p0, axis=-1, keepdims=True)   # (N, 1)
    acc1_ref[...] += jnp.sum(p1, axis=-1, keepdims=True)

    @pl.when(k == pl.num_programs(0) - 1)
    def _():
        z0 = acc0_ref[...] + b_ref[0]            # (N, 1) logit column 0
        z1 = acc1_ref[...] + b_ref[1]            # (N, 1) logit column 1
        # target: rows < N/2 -> [1, 0], rows >= N/2 -> [0, 1]  (generated in-kernel)
        rows = jax.lax.broadcasted_iota(jnp.int32, z0.shape, 0)
        t0 = (rows < half).astype(jnp.float32)
        t1 = 1.0 - t0
        # numerically-stable BCE-with-logits: max(z,0) - z*t + log1p(exp(-|z|))
        bce0 = jnp.maximum(z0, 0.0) - z0 * t0 + jnp.log1p(jnp.exp(-jnp.abs(z0)))
        bce1 = jnp.maximum(z1, 0.0) - z1 * t1 + jnp.log1p(jnp.exp(-jnp.abs(z1)))
        out_ref[0, 0] = (jnp.sum(bce0) + jnp.sum(bce1)) / denom


def discriminate_loss(outputs, targets, w, b, *, tk=2048):
    """outputs / targets: lists of (B, C_l, H_l, W_l) arrays (pairwise same shapes).
    w: (D, 2) linear-discriminator weight, b: (2,) bias, D = sum_l C_l*H_l*W_l."""
    assert len(outputs) == len(targets) and len(outputs) > 0
    # Equivalent to: cat([cat((o_l, t_l), 0) for l], 1).reshape(N, -1), but with
    # per-piece (free) reshapes first so no extra full-tensor copy / astype runs.
    top = jnp.concatenate([o.reshape(o.shape[0], -1) for o in outputs], axis=1)
    bot = jnp.concatenate([t.reshape(t.shape[0], -1) for t in targets], axis=1)
    x = jnp.concatenate([top, bot], axis=0)                  # (N, D), original dtype
    n, d = x.shape
    half = n // 2

    wt = jnp.asarray(w, jnp.float32).T                       # (2, D) lane-dense
    bb = jnp.asarray(b, jnp.float32).reshape(2)              # (2,)  -> SMEM

    d_pad = ((d + 127) // 128) * 128
    tk_eff = max(128, (min(int(tk), d_pad) // 128) * 128)    # multiple of 128 lanes
    grid_k = (d + tk_eff - 1) // tk_eff
    needs_mask = (d % tk_eff) != 0
    denom = float(n * 2)                                     # BCE 'mean' over N*2

    kernel = functools.partial(_disc_loss_kernel, d=d, tk=tk_eff, half=half,
                               denom=denom, needs_mask=needs_mask)

    loss = pl.pallas_call(
        kernel,
        out_shape=jax.ShapeDtypeStruct((1, 1), jnp.float32),
        grid_spec=pltpu.PrefetchScalarGridSpec(
            num_scalar_prefetch=0,
            grid=(grid_k,),
            in_specs=[
                pl.BlockSpec((n, tk_eff), lambda k: (0, k)),   # x chunk
                pl.BlockSpec((2, tk_eff), lambda k: (0, k)),   # weight chunk (2, tk)
                pl.BlockSpec(memory_space=pltpu.SMEM),         # bias scalars
            ],
            out_specs=pl.BlockSpec(memory_space=pltpu.SMEM),   # scalar loss
            scratch_shapes=[pltpu.VMEM((n, 1), jnp.float32),   # acc logit col 0
                            pltpu.VMEM((n, 1), jnp.float32)],  # acc logit col 1
        ),
        compiler_params=pltpu.CompilerParams(
            dimension_semantics=("arbitrary",)),               # reduction axis
    )(x, wt, bb)
    return loss[0, 0]


def _reference_loss(outputs, targets, w, b):
    """Pure-JAX reference matching the PyTorch module semantics."""
    top = jnp.concatenate([o.reshape(o.shape[0], -1) for o in outputs], axis=1)
    bot = jnp.concatenate([t.reshape(t.shape[0], -1) for t in targets], axis=1)
    x = jnp.concatenate([top, bot], axis=0).astype(jnp.float32)
    n = x.shape[0]
    half = n // 2
    z = jnp.dot(x, jnp.asarray(w, jnp.float32),
                precision=jax.lax.Precision.HIGHEST) + jnp.asarray(b, jnp.float32)
    t = jnp.concatenate(
        [jnp.tile(jnp.array([[1.0, 0.0]], jnp.float32), (half, 1)),
         jnp.tile(jnp.array([[0.0, 1.0]], jnp.float32), (half, 1))], axis=0)
    bce = jnp.maximum(z, 0.0) - z * t + jnp.log1p(jnp.exp(-jnp.abs(z)))
    return bce.mean()


if __name__ == "__main__":
    # small shapes: 2 feature maps per list, each (B=2, C=4, H=16, W=16)
    B, C, H, W = 2, 4, 16, 16
    L = 2
    D = L * C * H * W  # 2048

    key = jax.random.PRNGKey(0)
    k_out, k_tgt, k_w, k_b = jax.random.split(key, 4)

    outputs = [jax.random.normal(jax.random.fold_in(k_out, i), (B, C, H, W),
                                 dtype=jnp.float32) for i in range(L)]
    targets = [jax.random.normal(jax.random.fold_in(k_tgt, i), (B, C, H, W),
                                 dtype=jnp.float32) for i in range(L)]

    # deterministic synthetic discriminator params: Linear(D, 2)
    w = jax.random.normal(k_w, (D, 2), dtype=jnp.float32) / jnp.sqrt(float(D))
    b = jax.random.normal(k_b, (2,), dtype=jnp.float32) * 0.01

    # tk=768 exercises both multi-chunk accumulation and the masked tail path.
    loss = discriminate_loss(outputs, targets, w, b, tk=768)
    loss = jax.block_until_ready(loss)

    ref = jax.block_until_ready(_reference_loss(outputs, targets, w, b))
    assert jnp.allclose(loss, ref, rtol=1e-3, atol=1e-3), (loss, ref)

    print("KERNEL_OK")
</pallas_src>

<mosaic_0001>
module attributes {stable_mosaic.version = 11 : i64} {
  func.func @_disc_loss_kernel(%arg0: i32, %arg1: memref<4x768xf32, #tpu.memory_space<vmem>>, %arg2: memref<2x768xf32, #tpu.memory_space<vmem>>, %arg3: memref<2xf32, #tpu.memory_space<smem>>, %arg4: memref<1x1xf32, #tpu.memory_space<smem>>, %arg5: memref<4x1xf32, #tpu.memory_space<vmem>>, %arg6: memref<4x1xf32, #tpu.memory_space<vmem>>) attributes {dimension_semantics = [#tpu.dimension_semantics<arbitrary>], iteration_bounds = array<i64: 3>, scalar_prefetch = 0 : i64, scratch_operands = 2 : i64, tpu.core_type = #tpu.core_type<tc>, window_params = [{transform_indices = @transform_0, window_bounds = array<i64: 4, 768>}, {transform_indices = @transform_1, window_bounds = array<i64: 2, 768>}, {transform_indices = @transform_2, window_bounds = array<i64: 2>}, {transform_indices = @transform_3, window_bounds = array<i64: 1, 1>}]} {
    %c0_i32 = arith.constant 0 : i32
    %0 = arith.cmpi eq, %arg0, %c0_i32 : i32
    %1 = arith.extui %0 : i1 to i32
    %c0_i32_0 = arith.constant 0 : i32
    %2 = arith.cmpi ne, %1, %c0_i32_0 : i32
    scf.if %2 {
      %cst_16 = arith.constant 0.000000e+00 : f32
      %38 = vector.broadcast %cst_16 : f32 to vector<4x1xf32>
      %c0_17 = arith.constant 0 : index
      %c0_18 = arith.constant 0 : index
      %39 = vector.load %arg5[%c0_17, %c0_18] : memref<4x1xf32, #tpu.memory_space<vmem>>, vector<4x1xf32>
      tpu.vector_store %arg5[%c0_17, %c0_18], %38 {strides = array<i32>} : memref<4x1xf32, #tpu.memory_space<vmem>>, vector<4x1xf32>,
      %cst_19 = arith.constant 0.000000e+00 : f32
      %40 = vector.broadcast %cst_19 : f32 to vector<4x1xf32>
      %c0_20 = arith.constant 0 : index
      %c0_21 = arith.constant 0 : index
      %41 = vector.load %arg6[%c0_20, %c0_21] : memref<4x1xf32, #tpu.memory_space<vmem>>, vector<4x1xf32>
      tpu.vector_store %arg6[%c0_20, %c0_21], %40 {strides = array<i32>} : memref<4x1xf32, #tpu.memory_space<vmem>>, vector<4x1xf32>,
    } else {
    }
    %c0 = arith.constant 0 : index
    %c0_1 = arith.constant 0 : index
    %3 = vector.load %arg1[%c0, %c0_1] : memref<4x768xf32, #tpu.memory_space<vmem>>, vector<4x768xf32>
    %c0_2 = arith.constant 0 : index
    %c0_3 = arith.constant 0 : index
    %4 = vector.load %arg2[%c0_2, %c0_3] : memref<2x768xf32, #tpu.memory_space<vmem>>, vector<2x768xf32>
    %5 = vector.extract_strided_slice %4 {offsets = [0, 0], sizes = [1, 768], strides = [1, 1]} : vector<2x768xf32> to vector<1x768xf32>
    %6 = vector.broadcast %5 : vector<1x768xf32> to vector<4x768xf32>
    %7 = arith.mulf %3, %6 : vector<4x768xf32>
    %8 = vector.extract_strided_slice %4 {offsets = [1, 0], sizes = [1, 768], strides = [1, 1]} : vector<2x768xf32> to vector<1x768xf32>
    %9 = vector.broadcast %8 : vector<1x768xf32> to vector<4x768xf32>
    %10 = arith.mulf %3, %9 : vector<4x768xf32>
    %11 = tpu.iota {dimensions = array<i32: 1>} : vector<1x768xi32>
    %c768_i32 = arith.constant 768 : i32
    %12 = arith.muli %arg0, %c768_i32 : i32
    %13 = vector.broadcast %12 : i32 to vector<1x768xi32>
    %14 = arith.addi %11, %13 : vector<1x768xi32>
    %c2048_i32 = arith.constant 2048 : i32
    %15 = vector.broadcast %c2048_i32 : i32 to vector<1x768xi32>
    %16 = arith.cmpi slt, %14, %15 : vector<1x768xi32>
    %cst = arith.constant 0.000000e+00 : f32
    %17 = vector.shape_cast %16 : vector<1x768xi1> to vector<1x768xi1>
    %18 = vector.broadcast %17 : vector<1x768xi1> to vector<4x768xi1>
    %19 = vector.broadcast %cst : f32 to vector<4x768xf32>
    %20 = arith.select %18, %7, %19 : vector<4x768xi1>, vector<4x768xf32>
    %cst_4 = arith.constant 0.000000e+00 : f32
    %21 = vector.shape_cast %16 : vector<1x768xi1> to vector<1x768xi1>
    %22 = vector.broadcast %21 : vector<1x768xi1> to vector<4x768xi1>
    %23 = vector.broadcast %cst_4 : f32 to vector<4x768xf32>
    %24 = arith.select %22, %10, %23 : vector<4x768xi1>, vector<4x768xf32>
    %c0_5 = arith.constant 0 : index
    %c0_6 = arith.constant 0 : index
    %25 = vector.load %arg5[%c0_5, %c0_6] : memref<4x1xf32, #tpu.memory_space<vmem>>, vector<4x1xf32>
    %cst_7 = arith.constant dense<0.000000e+00> : vector<4xf32>
    %26 = vector.multi_reduction <add>, %20, %cst_7 [1] : vector<4x768xf32> to vector<4xf32>
    %27 = vector.shape_cast %26 : vector<4xf32> to vector<4x1xf32>
    %28 = arith.addf %25, %27 : vector<4x1xf32>
    %c0_8 = arith.constant 0 : index
    %c0_9 = arith.constant 0 : index
    %29 = vector.load %arg5[%c0_8, %c0_9] : memref<4x1xf32, #tpu.memory_space<vmem>>, vector<4x1xf32>
    tpu.vector_store %arg5[%c0_8, %c0_9], %28 {strides = array<i32>} : memref<4x1xf32, #tpu.memory_space<vmem>>, vector<4x1xf32>,
    %c0_10 = arith.constant 0 : index
    %c0_11 = arith.constant 0 : index
    %30 = vector.load %arg6[%c0_10, %c0_11] : memref<4x1xf32, #tpu.memory_space<vmem>>, vector<4x1xf32>
    %cst_12 = arith.constant dense<0.000000e+00> : vector<4xf32>
    %31 = vector.multi_reduction <add>, %24, %cst_12 [1] : vector<4x768xf32> to vector<4xf32>
    %32 = vector.shape_cast %31 : vector<4xf32> to vector<4x1xf32>
    %33 = arith.addf %30, %32 : vector<4x1xf32>
    %c0_13 = arith.constant 0 : index
    %c0_14 = arith.constant 0 : index
    %34 = vector.load %arg6[%c0_13, %c0_14] : memref<4x1xf32, #tpu.memory_space<vmem>>, vector<4x1xf32>
    tpu.vector_store %arg6[%c0_13, %c0_14], %33 {strides = array<i32>} : memref<4x1xf32, #tpu.memory_space<vmem>>, vector<4x1xf32>,
    %c2_i32 = arith.constant 2 : i32
    %35 = arith.cmpi eq, %arg0, %c2_i32 : i32
    %36 = arith.extui %35 : i1 to i32
    %c0_i32_15 = arith.constant 0 : i32
    %37 = arith.cmpi ne, %36, %c0_i32_15 : i32
    scf.if %37 {
      %c0_16 = arith.constant 0 : index
      %c0_17 = arith.constant 0 : index
      %38 = vector.load %arg5[%c0_16, %c0_17] : memref<4x1xf32, #tpu.memory_space<vmem>>, vector<4x1xf32>
      %c0_18 = arith.constant 0 : index
      %39 = memref.load %arg3[%c0_18] : memref<2xf32, #tpu.memory_space<smem>>
      %40 = vector.broadcast %39 : f32 to vector<4x1xf32>
      %41 = arith.addf %38, %40 : vector<4x1xf32>
      %c0_19 = arith.constant 0 : index
      %c0_20 = arith.constant 0 : index
      %42 = vector.load %arg6[%c0_19, %c0_20] : memref<4x1xf32, #tpu.memory_space<vmem>>, vector<4x1xf32>
      %c1 = arith.constant 1 : index
      %43 = memref.load %arg3[%c1] : memref<2xf32, #tpu.memory_space<smem>>
      %44 = vector.broadcast %43 : f32 to vector<4x1xf32>
      %45 = arith.addf %42, %44 : vector<4x1xf32>
      %46 = tpu.iota {dimensions = array<i32: 0>} : vector<4x1xi32>
      %c2_i32_21 = arith.constant 2 : i32
      %47 = vector.broadcast %c2_i32_21 : i32 to vector<4x1xi32>
      %48 = arith.cmpi slt, %46, %47 : vector<4x1xi32>
      %49 = arith.extui %48 : vector<4x1xi1> to vector<4x1xi32>
      %50 = arith.sitofp %49 : vector<4x1xi32> to vector<4x1xf32>
      %cst_22 = arith.constant 1.000000e+00 : f32
      %51 = vector.broadcast %cst_22 : f32 to vector<4x1xf32>
      %52 = arith.subf %51, %50 : vector<4x1xf32>
      %cst_23 = arith.constant 0.000000e+00 : f32
      %53 = vector.broadcast %cst_23 : f32 to vector<4x1xf32>
      %54 = arith.maximumf %41, %53 : vector<4x1xf32>
      %55 = arith.mulf %41, %50 : vector<4x1xf32>
      %56 = arith.subf %54, %55 : vector<4x1xf32>
      %57 = math.absf %41 : vector<4x1xf32>
      %cst_24 = arith.constant 0.000000e+00 : f32
      %58 = vector.broadcast %cst_24 : f32 to vector<4x1xf32>
      %59 = arith.subf %58, %57 : vector<4x1xf32>
      %60 = math.exp %59 : vector<4x1xf32>
      %61 = math.log1p %60 : vector<4x1xf32>
      %62 = arith.addf %56, %61 : vector<4x1xf32>
      %cst_25 = arith.constant 0.000000e+00 : f32
      %63 = vector.broadcast %cst_25 : f32 to vector<4x1xf32>
      %64 = arith.maximumf %45, %63 : vector<4x1xf32>
      %65 = arith.mulf %45, %52 : vector<4x1xf32>
      %66 = arith.subf %64, %65 : vector<4x1xf32>
      %67 = math.absf %45 : vector<4x1xf32>
      %cst_26 = arith.constant 0.000000e+00 : f32
      %68 = vector.broadcast %cst_26 : f32 to vector<4x1xf32>
      %69 = arith.subf %68, %67 : vector<4x1xf32>
      %70 = math.exp %69 : vector<4x1xf32>
      %71 = math.log1p %70 : vector<4x1xf32>
      %72 = arith.addf %66, %71 : vector<4x1xf32>
      %73 = vector.shape_cast %62 : vector<4x1xf32> to vector<1x4x1xf32>
      %cst_27 = arith.constant dense<0.000000e+00> : vector<1xf32>
      %74 = vector.multi_reduction <add>, %73, %cst_27 [1, 2] : vector<1x4x1xf32> to vector<1xf32>
      %75 = vector.shape_cast %74 : vector<1xf32> to vector<1x1x1xf32>
      %76 = vector.extract %75[0, 0, 0] : f32 from vector<1x1x1xf32>
      %77 = vector.shape_cast %72 : vector<4x1xf32> to vector<1x4x1xf32>
      %cst_28 = arith.constant dense<0.000000e+00> : vector<1xf32>
      %78 = vector.multi_reduction <add>, %77, %cst_28 [1, 2] : vector<1x4x1xf32> to vector<1xf32>
      %79 = vector.shape_cast %78 : vector<1xf32> to vector<1x1x1xf32>
      %80 = vector.extract %79[0, 0, 0] : f32 from vector<1x1x1xf32>
      %81 = arith.addf %76, %80 : f32
      %cst_29 = arith.constant 8.000000e+00 : f32
      %82 = arith.divf %81, %cst_29 : f32
      %c0_30 = arith.constant 0 : index
      %c0_31 = arith.constant 0 : index
      %83 = memref.load %arg4[%c0_30, %c0_31] : memref<1x1xf32, #tpu.memory_space<smem>>
      memref.store %82, %arg4[%c0_30, %c0_31] : memref<1x1xf32, #tpu.memory_space<smem>>
    } else {
    }
    return
  }
  func.func @transform_0(%arg0: i32) -> (i32, i32) {
    %c0_i32 = arith.constant 0 : i32
    %c0_i32_0 = arith.constant 0 : i32
    return %c0_i32, %arg0 : i32, i32
  }
  func.func @transform_1(%arg0: i32) -> (i32, i32) {
    %c0_i32 = arith.constant 0 : i32
    %c0_i32_0 = arith.constant 0 : i32
    return %c0_i32, %arg0 : i32, i32
  }
  func.func @transform_2(%arg0: i32) -> i32 {
    %c0_i32 = arith.constant 0 : i32
    %c0_i32_0 = arith.constant 0 : i32
    return %c0_i32 : i32
  }
  func.func @transform_3(%arg0: i32) -> (i32, i32) {
    %c0_i32 = arith.constant 0 : i32
    %c0_i32_0 = arith.constant 0 : i32
    %c0_i32_1 = arith.constant 0 : i32
    return %c0_i32, %c0_i32_0 : i32, i32
  }
}

</mosaic_0001>

<llo_original>
// kernel: tpu_custom_call.1
$region0: #{tpu_custom_call.1}
  #allocation0 [shape = 'u32[]', space=smem, size = 0x4, offset = 0x4, fixed_abs, tag = 'smem constant byte address 0x4 - core index']
  #allocation1 [shape = 'u32[144,128]{1,0:T(1,128)}', space=vmem, size = 0x12000, scoped, tag = 'internal scratch']
  #allocation2 [shape = 'f32[4,1]{1,0:T(4,128)}', space=vmem, size = 0x800, scoped, tag = 'scratch operand']
  #allocation3 [shape = 'f32[4,1]{1,0:T(4,128)}', space=vmem, size = 0x800, scoped, tag = 'scratch operand']
  %s0 = inlined_call_operand.hbm [shape: f32[4,2048], index: 0, kind: input, shape index: {}]
  %s1 = inlined_call_operand.hbm [shape: f32[2,2048], index: 1, kind: input, shape index: {}]
  %s2 = inlined_call_operand.vmem [shape: f32[2], index: 2, kind: input, shape index: {}]
  %s3 = inlined_call_operand.hbm [shape: f32[1,1], index: 3, kind: output, shape index: {}]
  %s4 = sld [smem:[#allocation0]]
  $region65: #{tpu_custom_call.1} parent=0
    _
  %s6 = ssub.s32 1, %s4
  %s7 = scalar_select 0, %s6, %s4
  $region1: #{tpu_custom_call.1} parent=0
    #allocation4 [shape = 'u8[24576]{0}', space=vmem, size = 0x6000, scoped, tag = 'input window, operand 0']
    #allocation5 [shape = 's32[2]{0}', space=sflag, size = 0x8, scoped, tag = 'scoped memory for tpu_custom_call.1']
    #allocation6 [shape = 's32[2]{0}', space=sflag, size = 0x8, scoped, tag = 'scoped memory for tpu_custom_call.1']
    #allocation7 [shape = 's32[2]{0}', space=sflag, size = 0x8, scoped, tag = 'scoped memory for tpu_custom_call.1']
    #allocation8 [shape = 'u8[12288]{0}', space=vmem, size = 0x3000, scoped, tag = 'input window, operand 1']
    #allocation9 [shape = 's32[2]{0}', space=sflag, size = 0x8, scoped, tag = 'scoped memory for tpu_custom_call.1']
    #allocation10 [shape = 'u8[512]{0}', space=smem, size = 0x200, scoped, tag = 'input window, operand 2, single buffered']
    #allocation11 [shape = 'u8[512]{0}', space=smem, size = 0x200, scoped, tag = 'output window, operand 0, single buffered']
    %8 = vsyncpa [#allocation5], 0
    %s9 = scalar_lea.sflag [#allocation5], 1
    %10 = vsyncpa %s9, 0
    %11 = vsyncpa [#allocation9], 0
    %s12 = scalar_lea.sflag [#allocation9], 1
    %13 = vsyncpa %s12, 0
    %14 = vsyncpa [#allocation7], 0
    %15 = vsyncpa [#allocation6], 0
    loop: start=0, step=1, limit=5
    $region2: #{tpu_custom_call.1} parent=1 // loop_pre_header
      _
    $region3: #{tpu_custom_call.1} parent=1 // loop_header
      %s17 = sphi 0, %s21
      %p18 = scmp.ge.s32.totalorder %s17, 5
      %s27 = sphi 0, %s29
      %s30 = sphi 0, %s27
      %s31 = sphi 0, %s30
      %s47 = sphi 0, %s31
      %s53 = sphi 0, %s55
      %s56 = sphi 0, %s53
      %s57 = sphi 0, %s56
      %s73 = sphi 0, %s57
      %s77 = sphi 0, %s77
      %s79 = sphi 0, %s77
      %s80 = sphi 0, %s79
      %s94 = sphi 0, %s80
      %s98 = sphi 0, %s98
      %s100 = sphi 0, %s98
      %s101 = sphi 0, %s100
      %s115 = sphi 0, %s101
    $region4: #{tpu_custom_call.1} parent=1 // loop_header_branch
      %20 = sbr.rel (%p18) target = $region8
    $region5: #{tpu_custom_call.1} parent=1 // loop_body
      %s22 = ssub.s32 %s17, 1
      %s23 = ssub.s32 %s17, 2
      %s24 = sadd.s32 %s17, 1
      %s25 = ssub.s32 %s17, %s24
      %p26 = scmp.eq.s32.totalorder %s25, 0
      %s28 = sadd.s32 %s27, 1
      %s29 = scalar_select %p26, %s27, %s28
      %p32 = pneg %p26
      %p33 = scmp.eq.s32.totalorder %s17, 2
      %p34 = por %p32, %p33
      %p35 = scmp.ne.s32.totalorder %s27, %s30
      %p36 = scmp.eq.s32.totalorder %s17, 0
      %p37 = por %p35, %p36
      %p38 = scmp.ne.s32.totalorder %s27, %s30
      %p39 = scmp.eq.s32.totalorder %s22, 2
      %p40 = por %p38, %p39
      %p41 = scmp.ne.s32.totalorder %s30, %s31
      %p42 = scmp.eq.s32.totalorder %s22, 0
      %p43 = por %p41, %p42
      %p44 = scmp.ne.s32.totalorder %s30, %s31
      %p45 = scmp.eq.s32.totalorder %s23, 2
      %p46 = por %p44, %p45
      %p48 = scmp.ne.s32.totalorder %s31, %s47
      %p49 = scmp.eq.s32.totalorder %s23, 0
      %p50 = por %p48, %p49
      %s51 = ssub.s32 %s17, %s24
      %p52 = scmp.eq.s32.totalorder %s51, 0
      %s54 = sadd.s32 %s53, 1
      %s55 = scalar_select %p52, %s53, %s54
      %p58 = pneg %p52
      %p59 = scmp.eq.s32.totalorder %s17, 2
      %p60 = por %p58, %p59
      %p61 = scmp.ne.s32.totalorder %s53, %s56
      %p62 = scmp.eq.s32.totalorder %s17, 0
      %p63 = por %p61, %p62
      %p64 = scmp.ne.s32.totalorder %s53, %s56
      %p65 = scmp.eq.s32.totalorder %s22, 2
      %p66 = por %p64, %p65
      %p67 = scmp.ne.s32.totalorder %s56, %s57
      %p68 = scmp.eq.s32.totalorder %s22, 0
      %p69 = por %p67, %p68
      %p70 = scmp.ne.s32.totalorder %s56, %s57
      %p71 = scmp.eq.s32.totalorder %s23, 2
      %p72 = por %p70, %p71
      %p74 = scmp.ne.s32.totalorder %s57, %s73
      %p75 = scmp.eq.s32.totalorder %s23, 0
      %p76 = por %p74, %p75
      %s78 = sadd.s32 %s77, 1
      %p81 = scmp.eq.s32.totalorder %s17, 2
      %p82 = scmp.ne.s32.totalorder %s77, %s79
      %p83 = scmp.eq.s32.totalorder %s17, 0
      %p84 = por %p82, %p83
      %p85 = scmp.ne.s32.totalorder %s77, %s79
      %p86 = scmp.eq.s32.totalorder %s22, 2
      %p87 = por %p85, %p86
      %p88 = scmp.ne.s32.totalorder %s79, %s80
      %p89 = scmp.eq.s32.totalorder %s22, 0
      %p90 = por %p88, %p89
      %p91 = scmp.ne.s32.totalorder %s79, %s80
      %p92 = scmp.eq.s32.totalorder %s23, 2
      %p93 = por %p91, %p92
      %p95 = scmp.ne.s32.totalorder %s80, %s94
      %p96 = scmp.eq.s32.totalorder %s23, 0
      %p97 = por %p95, %p96
      %s99 = sadd.s32 %s98, 1
      %p102 = scmp.eq.s32.totalorder %s17, 2
      %p103 = scmp.ne.s32.totalorder %s98, %s100
      %p104 = scmp.eq.s32.totalorder %s17, 0
      %p105 = por %p103, %p104
      %p106 = scmp.ne.s32.totalorder %s98, %s100
      %p107 = scmp.eq.s32.totalorder %s22, 2
      %p108 = por %p106, %p107
      %p109 = scmp.ne.s32.totalorder %s100, %s101
      %p110 = scmp.eq.s32.totalorder %s22, 0
      %p111 = por %p109, %p110
      %p112 = scmp.ne.s32.totalorder %s100, %s101
      %p113 = scmp.eq.s32.totalorder %s23, 2
      %p114 = por %p112, %p113
      %p116 = scmp.ne.s32.totalorder %s101, %s115
      %p117 = scmp.eq.s32.totalorder %s23, 0
      %p118 = por %p116, %p117
      %p119 = scmp.le.s32.totalorder 1, %s17
      %p120 = scmp.lt.s32.totalorder %s17, 4
      %p121 = pnand %p119, %p120
      %p122 = pneg %p121
      // Predicated region
      $region9: #{tpu_custom_call.1} parent=5 // pred_check
        _
      $region10: #{tpu_custom_call.1} parent=5 // pred_check_branch
        %124 = sbr.rel (%p121) target = $region12
      $region11: #{tpu_custom_call.1} parent=5 // pred_region
        %s125 = ssub.s32 %s17, 1
        // Predicated region
        $region13: #{tpu_custom_call.1} parent=11 // pred_check
          %p126 = pneg %p90
        $region14: #{tpu_custom_call.1} parent=11 // pred_check_branch
          %128 = sbr.rel (%p126) target = $region16
        $region15: #{tpu_custom_call.1} parent=11 // pred_region
          %s130 = ssub.s32 16, 16
          %131 = vsyncadd [#allocation7], %s130
          %s133 = sshll.u32 %s2, 4
          %s134 = int_to_ptr.vmem [resolvable:$true] %s133
          %136 = dma.vmem_to_smem %s134, 16, [#allocation10], [#allocation7]
        $region16: #{tpu_custom_call.1} parent=11 // pred_fallthru
          _
      $region12: #{tpu_custom_call.1} parent=5 // pred_fallthru
        _
      %p137 = scmp.lt.s32.totalorder %s17, 3
      // Predicated region
      $region17: #{tpu_custom_call.1} parent=5 // pred_check
        %p138 = pneg %p137
      $region18: #{tpu_custom_call.1} parent=5 // pred_check_branch
        %140 = sbr.rel (%p138) target = $region20
      $region19: #{tpu_custom_call.1} parent=5 // pred_region
        // Predicated region
        $region21: #{tpu_custom_call.1} parent=19 // pred_check
          %p141 = pneg %p37
        $region22: #{tpu_custom_call.1} parent=19 // pred_check_branch
          %143 = sbr.rel (%p141) target = $region24
        $region23: #{tpu_custom_call.1} parent=19 // pred_region
          %s144 = sand.u32 %s27, 1
          %s145 = scalar_lea.sflag [#allocation5], %s144
          %s146 = sand.u32 %s27, 1
          %s147 = smul.addr %s146, 24
          %s148 = scalar_lea.vmem [#allocation4], %s147
          %s149 = smul.u32 6, %s17
          %s150 = ssub.s32 16, %s149
          %p151 = scmp.lt.s32.totalorder %s150, 6
          %s152 = scalar_select %p151, %s150, 6
          %s153 = smul.u32 64, %s152
          %s155 = ssub.s32 384, %s153
          %156 = vsyncadd %s145, %s155
          %p157 = scmp.ne.s32.totalorder 0, %s153
          %s158 = smul.addr %s149, 64
          %s159 = scalar_lea.hbm %s0, %s158
          %s160 = smul.u32 %s152, 4
          %s161 = sshll.u32 %s160, 4
          %s162 = sshll.u32 %s148, 4
          %s163 = int_to_ptr.vmem [resolvable:$true] %s162
          %165 = dma.hbm_to_vmem [thread:$0]  (%p157), %s159, %s161, %s163, %s145
        $region24: #{tpu_custom_call.1} parent=19 // pred_fallthru
          _
        // Predicated region
        $region25: #{tpu_custom_call.1} parent=19 // pred_check
          %p166 = pneg %p63
        $region26: #{tpu_custom_call.1} parent=19 // pred_check_branch
          %168 = sbr.rel (%p166) target = $region28
        $region27: #{tpu_custom_call.1} parent=19 // pred_region
          %s169 = sand.u32 %s53, 1
          %s170 = scalar_lea.sflag [#allocation9], %s169
          %s171 = sand.u32 %s53, 1
          %s172 = smul.addr %s171, 12
          %s173 = scalar_lea.vmem [#allocation8], %s172
          %s174 = smul.u32 6, %s17
          %s175 = ssub.s32 16, %s174
          %p176 = scmp.lt.s32.totalorder %s175, 6
          %s177 = scalar_select %p176, %s175, 6
          %s178 = smul.u32 32, %s177
          %s180 = ssub.s32 192, %s178
          %181 = vsyncadd %s170, %s180
          %p182 = scmp.ne.s32.totalorder 0, %s178
          %s183 = smul.addr %s174, 32
          %s184 = scalar_lea.hbm %s1, %s183
          %s185 = smul.u32 %s177, 2
          %s186 = sshll.u32 %s185, 4
          %s187 = sshll.u32 %s173, 4
          %s188 = int_to_ptr.vmem [resolvable:$true] %s187
          %190 = dma.hbm_to_vmem [thread:$0]  (%p182), %s184, %s186, %s188, %s170
        $region28: #{tpu_custom_call.1} parent=19 // pred_fallthru
          _
      $region20: #{tpu_custom_call.1} parent=5 // pred_fallthru
        _
      %p191 = scmp.le.s32.totalorder 1, %s17
      %p192 = scmp.lt.s32.totalorder %s17, 4
      %p193 = pnand %p191, %p192
      %p194 = pneg %p193
      // Predicated region
      $region29: #{tpu_custom_call.1} parent=5 // pred_check
        _
      $region30: #{tpu_custom_call.1} parent=5 // pred_check_branch
        %196 = sbr.rel (%p193) target = $region32
      $region31: #{tpu_custom_call.1} parent=5 // pred_region
        %s197 = ssub.s32 %s17, 1
        %s198 = sand.u32 %s30, 1
        %s199 = scalar_lea.sflag [#allocation5], %s198
        %s200 = sand.u32 %s30, 1
        %s201 = smul.addr %s200, 24
        %s202 = scalar_lea.vmem [#allocation4], %s201
        // Predicated region
        $region33: #{tpu_custom_call.1} parent=31 // pred_check
          %p203 = pneg %p43
        $region34: #{tpu_custom_call.1} parent=31 // pred_check_branch
          %205 = sbr.rel (%p203) target = $region36
        $region35: #{tpu_custom_call.1} parent=31 // pred_region
          %206 = dma.done %s199, 384
        $region36: #{tpu_custom_call.1} parent=31 // pred_fallthru
          _
        %s207 = sand.u32 %s56, 1
        %s208 = scalar_lea.sflag [#allocation9], %s207
        %s209 = sand.u32 %s56, 1
        %s210 = smul.addr %s209, 12
        %s211 = scalar_lea.vmem [#allocation8], %s210
        // Predicated region
        $region37: #{tpu_custom_call.1} parent=31 // pred_check
          %p212 = pneg %p69
        $region38: #{tpu_custom_call.1} parent=31 // pred_check_branch
          %214 = sbr.rel (%p212) target = $region40
        $region39: #{tpu_custom_call.1} parent=31 // pred_region
          %215 = dma.done %s208, 192
        $region40: #{tpu_custom_call.1} parent=31 // pred_fallthru
          _
        // Predicated region
        $region41: #{tpu_custom_call.1} parent=31 // pred_check
          %p216 = pneg %p90
        $region42: #{tpu_custom_call.1} parent=31 // pred_check_branch
          %218 = sbr.rel (%p216) target = $region44
        $region43: #{tpu_custom_call.1} parent=31 // pred_region
          %219 = dma.done [#allocation7], 16
        $region44: #{tpu_custom_call.1} parent=31 // pred_fallthru
          _
        %220 = sfence
        %s221 = sand.u32 %s30, 1
        %s222 = scalar_lea.sflag [#allocation5], %s221
        %s223 = sand.u32 %s30, 1
        %s224 = smul.addr %s223, 24
        %s225 = scalar_lea.vmem [#allocation4], %s224
        %p226 = pneg %p43
        %p227 = pneg %p40
        %s228 = sand.u32 %s56, 1
        %s229 = scalar_lea.sflag [#allocation9], %s228
        %s230 = sand.u32 %s56, 1
        %s231 = smul.addr %s230, 12
        %s232 = scalar_lea.vmem [#allocation8], %s231
        %p233 = pneg %p69
        %p234 = pneg %p66
        %p235 = pneg %p90
        %p236 = pneg %p87
        %p237 = pneg %p111
        %p238 = pneg %p108
        %s239 = smul.u32 6, %s22
        %s240 = ssub.s32 16, %s239
        %p241 = scmp.lt.s32.totalorder %s240, 6
        %s242 = scalar_select %p241, %s240, 6
        %s243 = smul.u32 64, %s242
        %s244 = smul.u32 6, %s22
        %s245 = ssub.s32 16, %s244
        %p246 = scmp.lt.s32.totalorder %s245, 6
        %s247 = scalar_select %p246, %s245, 6
        %s248 = smul.u32 32, %s247
        %p249 = scmp.eq.s32.totalorder %s22, 0
        // Predicated region
        $region45: #{tpu_custom_call.1} parent=31 // pred_check
          %p250 = pneg %p249
        $region46: #{tpu_custom_call.1} parent=31 // pred_check_branch
          %252 = sbr.rel (%p250) target = $region48
        $region47: #{tpu_custom_call.1} parent=31 // pred_region
          %vm253 = vcmask 3072
          %254 = vst.msk [vmem:[#allocation2] sm:$0xf] %vm253, 0.0
          %255 = vst.msk [vmem:[#allocation3] sm:$0xf] %vm253, 0.0
        $region48: #{tpu_custom_call.1} parent=31 // pred_fallthru
          _
        %v256 = vld [vmem:[%s202] sm:$0xff]
        %v257 = vld [vmem:[%s202 + $0x8] sm:$0xff]
        %v258 = vld [vmem:[%s202 + $0x10] sm:$0xff]
        %v259 = vld [vmem:[%s211] sm:$0xff]
        %v260 = vld [vmem:[%s211 + $0x8] sm:$0xf]
        %v263 = vlaneseq
        %v264 = vshrl.u32 %v263, 7
        %v265 = vsub.s32 0, %v264
        %v266 = vrot.slane %v259, %v265
        %v267 = vlaneseq
        %v268 = vshrl.u32 %v267, 7
        %v269 = vsub.s32 2, %v268
        %v270 = vrot.slane %v259, %v269
        %v271 = vlaneseq
        %v272 = vshrl.u32 %v271, 7
        %v273 = vsub.s32 4, %v272
        %v274 = vrot.slane %v259, %v273
        %v275 = vlaneseq
        %v276 = vshrl.u32 %v275, 7
        %v277 = vsub.s32 6, %v276
        %v278 = vrot.slane %v259, %v277
        %v279 = vlaneseq
        %v280 = vshrl.u32 %v279, 7
        %v281 = vsub.s32 0, %v280
        %v282 = vrot.slane %v260, %v281
        %v283 = vlaneseq
        %v284 = vshrl.u32 %v283, 7
        %v285 = vsub.s32 2, %v284
        %v286 = vrot.slane %v260, %v285
        %v293 = vlaneseq
        %v294 = vshrl.u32 %v293, 7
        %v295 = vsub.s32 0, %v294
        %v296 = vrot.slane %v266, %v295
        %v297 = vlaneseq
        %v298 = vshrl.u32 %v297, 7
        %v299 = vsub.s32 0, %v298
        %v300 = vrot.slane %v270, %v299
        %v301 = vlaneseq
        %v302 = vshrl.u32 %v301, 7
        %v303 = vsub.s32 0, %v302
        %v304 = vrot.slane %v274, %v303
        %v305 = vlaneseq
        %v306 = vshrl.u32 %v305, 7
        %v307 = vsub.s32 0, %v306
        %v308 = vrot.slane %v278, %v307
        %v309 = vlaneseq
        %v310 = vshrl.u32 %v309, 7
        %v311 = vsub.s32 0, %v310
        %v312 = vrot.slane %v282, %v311
        %v313 = vlaneseq
        %v314 = vshrl.u32 %v313, 7
        %v315 = vsub.s32 0, %v314
        %v316 = vrot.slane %v286, %v315
        %v323 = vcombine.low %v296, %v300
        %v324 = vcombine.low %v304, %v308
        %v325 = vcombine.low %v312, %v316
        %v329 = vmul.f32 %v256, %v323
        %v330 = vmul.f32 %v257, %v324
        %v331 = vmul.f32 %v258, %v325
        %v332 = vlaneseq
        %v333 = vshrl.u32 %v332, 7
        %v334 = vsub.s32 1, %v333
        %v335 = vrot.slane %v259, %v334
        %v336 = vlaneseq
        %v337 = vshrl.u32 %v336, 7
        %v338 = vsub.s32 3, %v337
        %v339 = vrot.slane %v259, %v338
        %v340 = vlaneseq
        %v341 = vshrl.u32 %v340, 7
        %v342 = vsub.s32 5, %v341
        %v343 = vrot.slane %v259, %v342
        %v344 = vlaneseq
        %v345 = vshrl.u32 %v344, 7
        %v346 = vsub.s32 7, %v345
        %v347 = vrot.slane %v259, %v346
        %v348 = vlaneseq
        %v349 = vshrl.u32 %v348, 7
        %v350 = vsub.s32 1, %v349
        %v351 = vrot.slane %v260, %v350
        %v352 = vlaneseq
        %v353 = vshrl.u32 %v352, 7
        %v354 = vsub.s32 3, %v353
        %v355 = vrot.slane %v260, %v354
        %v362 = vlaneseq
        %v363 = vshrl.u32 %v362, 7
        %v364 = vsub.s32 1, %v363
        %v365 = vrot.slane %v335, %v364
        %v366 = vlaneseq
        %v367 = vshrl.u32 %v366, 7
        %v368 = vsub.s32 1, %v367
        %v369 = vrot.slane %v339, %v368
        %v370 = vlaneseq
        %v371 = vshrl.u32 %v370, 7
        %v372 = vsub.s32 1, %v371
        %v373 = vrot.slane %v343, %v372
        %v374 = vlaneseq
        %v375 = vshrl.u32 %v374, 7
        %v376 = vsub.s32 1, %v375
        %v377 = vrot.slane %v347, %v376
        %v378 = vlaneseq
        %v379 = vshrl.u32 %v378, 7
        %v380 = vsub.s32 1, %v379
        %v381 = vrot.slane %v351, %v380
        %v382 = vlaneseq
        %v383 = vshrl.u32 %v382, 7
        %v384 = vsub.s32 1, %v383
        %v385 = vrot.slane %v355, %v384
        %v392 = vcombine.low %v365, %v369
        %v393 = vcombine.low %v373, %v377
        %v394 = vcombine.low %v381, %v385
        %v398 = vmul.f32 %v256, %v392
        %v399 = vmul.f32 %v257, %v393
        %v400 = vmul.f32 %v258, %v394
        %v401 = vlaneseq
        %v402 = vand.u32 %v401, 127
        %v403 = vadd.s32 %v402, 128
        %v404 = vadd.s32 %v402, 256
        %v405 = vadd.s32 %v402, 384
        %v406 = vadd.s32 %v402, 512
        %v407 = vadd.s32 %v402, 640
        %s408 = smul.u32 %s22, 768
        %v409 = vstv %s408
        %v410 = vadd.s32 %v402, %v409
        %v411 = vadd.s32 %v403, %v409
        %v412 = vadd.s32 %v404, %v409
        %v413 = vadd.s32 %v405, %v409
        %v414 = vadd.s32 %v406, %v409
        %v415 = vadd.s32 %v407, %v409
        %vm416 = vcmp.lt.s32.totalorder %v410, 2048
        %vm417 = vcmp.lt.s32.totalorder %v411, 2048
        %vm418 = vcmp.lt.s32.totalorder %v412, 2048
        %vm419 = vcmp.lt.s32.totalorder %v413, 2048
        %vm420 = vcmp.lt.s32.totalorder %v414, 2048
        %vm421 = vcmp.lt.s32.totalorder %v415, 2048
        %v422 = vsel %vm416, 1, 0
        %v423 = vsel %vm417, 1, 0
        %v424 = vsel %vm418, 1, 0
        %v425 = vsel %vm419, 1, 0
        %v426 = vsel %vm420, 1, 0
        %v427 = vsel %vm421, 1, 0
        %vm428 = vcmp.eq.s32.totalorder %v422, 1
        %vm429 = vcmp.eq.s32.totalorder %v423, 1
        %vm430 = vcmp.eq.s32.totalorder %v424, 1
        %vm431 = vcmp.eq.s32.totalorder %v425, 1
        %vm432 = vcmp.eq.s32.totalorder %v426, 1
        %vm433 = vcmp.eq.s32.totalorder %v427, 1
        %v437 = vcombine.high %v329, %v329
        %v438 = vcombine.high %v330, %v330
        %v439 = vcombine.high %v331, %v331
        %v443 = vsel %vm428, %v329, 0.0
        %v444 = vsel %vm429, %v437, 0.0
        %v445 = vsel %vm430, %v330, 0.0
        %v446 = vsel %vm431, %v438, 0.0
        %v447 = vsel %vm432, %v331, 0.0
        %v448 = vsel %vm433, %v439, 0.0
        %v452 = vcombine.high %v398, %v398
        %v453 = vcombine.high %v399, %v399
        %v454 = vcombine.high %v400, %v400
        %v458 = vsel %vm428, %v398, 0.0
        %v459 = vsel %vm429, %v452, 0.0
        %v460 = vsel %vm430, %v399, 0.0
        %v461 = vsel %vm431, %v453, 0.0
        %v462 = vsel %vm432, %v400, 0.0
        %v463 = vsel %vm433, %v454, 0.0
        %v464 = vld [vmem:[#allocation2] sm:$0xf]
        %vm465 = vcmask 1043456
        %v466 = vsel %vm465, %v443, 0.0
        %v467 = vsel %vm465, %v444, 0.0
        %v468 = vadd.f32 %v466, %v467
        %v469 = vsel %vm465, %v445, 0.0
        %v470 = vadd.f32 %v468, %v469
        %v471 = vsel %vm465, %v446, 0.0
        %v472 = vadd.f32 %v470, %v471
        %v473 = vsel %vm465, %v447, 0.0
        %v474 = vadd.f32 %v472, %v473
        %v475 = vsel %vm465, %v448, 0.0
        %v476 = vadd.f32 %v474, %v475
        %477 = vadd.xlane.f32.xlu0 %v476
        %v478 = vpop.xlane.xlu0 %477
        %v479 = vadd.f32 %v464, %v478
        %vm480 = vcmask 3072
        %481 = vst.msk [vmem:[#allocation2] sm:$0xf] %vm480, %v479
        %v482 = vld [vmem:[#allocation3] sm:$0xf]
        %v483 = vsel %vm465, %v458, 0.0
        %v484 = vsel %vm465, %v459, 0.0
        %v485 = vadd.f32 %v483, %v484
        %v486 = vsel %vm465, %v460, 0.0
        %v487 = vadd.f32 %v485, %v486
        %v488 = vsel %vm465, %v461, 0.0
        %v489 = vadd.f32 %v487, %v488
        %v490 = vsel %vm465, %v462, 0.0
        %v491 = vadd.f32 %v489, %v490
        %v492 = vsel %vm465, %v463, 0.0
        %v493 = vadd.f32 %v491, %v492
        %494 = vadd.xlane.f32.xlu0 %v493
        %v495 = vpop.xlane.xlu0 %494
        %v496 = vadd.f32 %v482, %v495
        %497 = vst.msk [vmem:[#allocation3] sm:$0xf] %vm480, %v496
        %p498 = scmp.eq.s32.totalorder %s22, 2
        // Predicated region
        $region49: #{tpu_custom_call.1} parent=31 // pred_check
          %p499 = pneg %p498
        $region50: #{tpu_custom_call.1} parent=31 // pred_check_branch
          %501 = sbr.rel (%p499) target = $region52
        $region51: #{tpu_custom_call.1} parent=31 // pred_region
          %v502 = vld [vmem:[#allocation2] sm:$0xf]
          %s503 = sld [smem:[#allocation10]]
          %v504 = vstv %s503
          %v505 = vadd.f32 %v502, %v504
          %v506 = vld [vmem:[#allocation3] sm:$0xf]
          %s507 = sld [smem:[#allocation10 + $0x1]]
          %v508 = vstv %s507
          %v509 = vadd.f32 %v506, %v508
          %v510 = vlaneseq
          %v511 = vshrl.u32 %v510, 7
          %vm512 = vcmp.lt.s32.totalorder %v511, 2
          %v513 = vsel %vm512, 1, 0
          %v514 = vcvt.s32.f32 %v513
          %v515 = vsub.f32 1.0, %v514
          %v516 = vmax.f32 %v505, 0.0
          %v517 = vmul.f32 %v505, %v514
          %v518 = vsub.f32 %v516, %v517
          %v519 = vand.u32 2147483647, %v505
          %v520 = vsub.f32 0.0, %v519
          %v521 = vmul.f32 %v520, 1.442695
          %v522 = vpow.pop %v521
          %v523 = vadd.f32 %v522, 1.0
          %v524 = vlog2.pop %v523
          %v525 = vmul.f32 %v524, 0.6931472
          %v526 = vmul.f32 -0.5, %v522
          %v527 = vadd.f32 %v526, 1.0
          %v528 = vmul.f32 %v527, %v522
          %v529 = vand.u32 2147483647, %v522
          %vm530 = vcmp.lt.f32.partialorder %v529, 0.0004427343
          %v531 = vsel %vm530, %v528, %v525
          %v532 = vadd.f32 %v518, %v531
          %v533 = vmax.f32 %v509, 0.0
          %v534 = vmul.f32 %v509, %v515
          %v535 = vsub.f32 %v533, %v534
          %v536 = vand.u32 2147483647, %v509
          %v537 = vsub.f32 0.0, %v536
          %v538 = vmul.f32 %v537, 1.442695
          %v539 = vpow.pop %v538
          %v540 = vadd.f32 %v539, 1.0
          %v541 = vlog2.pop %v540
          %v542 = vmul.f32 %v541, 0.6931472
          %v543 = vmul.f32 -0.5, %v539
          %v544 = vadd.f32 %v543, 1.0
          %v545 = vmul.f32 %v544, %v539
          %v546 = vand.u32 2147483647, %v539
          %vm547 = vcmp.lt.f32.partialorder %v546, 0.0004427343
          %v548 = vsel %vm547, %v545, %v542
          %v549 = vadd.f32 %v535, %v548
          %v550 = vsel %vm480, %v532, 0.0
          %551 = vadd.xlane.f32.xlu0 %v550
          %v552 = vpop.xlane.xlu0 %551
          %v553 = vrot.slane %v552, 4
          %v554 = vadd.f32 %v552, %v553
          %v555 = vrot.slane %v554, 2
          %v556 = vadd.f32 %v554, %v555
          %v557 = vrot.slane %v556, 1
          %v558 = vadd.f32 %v556, %v557
          %s559 = vtos %v558
          %v560 = vsel %vm480, %v549, 0.0
          %561 = vadd.xlane.f32.xlu0 %v560
          %v562 = vpop.xlane.xlu0 %561
          %v563 = vrot.slane %v562, 4
          %v564 = vadd.f32 %v562, %v563
          %v565 = vrot.slane %v564, 2
          %v566 = vadd.f32 %v564, %v565
          %v567 = vrot.slane %v566, 1
          %v568 = vadd.f32 %v566, %v567
          %s569 = vtos %v568
          %s570 = sadd.f32 %s559, %s569
          %v571 = vrcp.pop 8.0
          %s572 = vtos %v571
          %s573 = smul.f32 %s570, %s572
          %s574 = scalar_lea.smem [#allocation11], 0
          %575 = sst [smem:[%s574]] %s573
        $region52: #{tpu_custom_call.1} parent=31 // pred_fallthru
          _
        // Predicated region
        $region53: #{tpu_custom_call.1} parent=31 // pred_check
          %p576 = pneg %p108
        $region54: #{tpu_custom_call.1} parent=31 // pred_check_branch
          %578 = sbr.rel (%p576) target = $region56
        $region55: #{tpu_custom_call.1} parent=31 // pred_region
          %s580 = ssub.s32 16, 16
          %581 = vsyncadd [#allocation6], %s580
          %584 = dma.smem_to_hbm [#allocation11], 16, %s3, [#allocation6]
        $region56: #{tpu_custom_call.1} parent=31 // pred_fallthru
          _
        // Predicated region
        $region57: #{tpu_custom_call.1} parent=31 // pred_check
          %p585 = pneg %p108
        $region58: #{tpu_custom_call.1} parent=31 // pred_check_branch
          %587 = sbr.rel (%p585) target = $region60
        $region59: #{tpu_custom_call.1} parent=31 // pred_region
          %588 = dma.done [#allocation6], 16
        $region60: #{tpu_custom_call.1} parent=31 // pred_fallthru
          _
        %589 = sfence
      $region32: #{tpu_custom_call.1} parent=5 // pred_fallthru
        _
      %p590 = scmp.le.s32.totalorder 2, %s17
      // Predicated region
      $region61: #{tpu_custom_call.1} parent=5 // pred_check
        %p591 = pneg %p590
      $region62: #{tpu_custom_call.1} parent=5 // pred_check_branch
        %593 = sbr.rel (%p591) target = $region64
      $region63: #{tpu_custom_call.1} parent=5 // pred_region
        %s594 = ssub.s32 %s17, 2
      $region64: #{tpu_custom_call.1} parent=5 // pred_fallthru
        _
    $region6: #{tpu_custom_call.1} parent=1 // loop_footer
      %s21 = sadd.s32 1, %s17
    $region7: #{tpu_custom_call.1} parent=1 // loop_footer_branch
      %16 = sbr.rel target = $region3
    $region8: #{tpu_custom_call.1} parent=1 // loop_exit
      _
    %595 = vsyncpa [#allocation5], 1
    %s596 = scalar_lea.sflag [#allocation5], 1
    %597 = vsyncpa %s596, 1
    %598 = vsyncpa [#allocation9], 1
    %s599 = scalar_lea.sflag [#allocation9], 1
    %600 = vsyncpa %s599, 1
    %601 = vsyncpa [#allocation6], 1
    %s602 = scalar_lea.sflag [#allocation6], 1
    %603 = vsyncpa %s602, 1
    %604 = vsyncpa [#allocation7], 1
    %s605 = scalar_lea.sflag [#allocation7], 1
    %606 = vsyncpa %s605, 1

</llo_original>
